<compile_context>
chip_gen: v7x
topology: tpu7x:2x2x1
jax: 0.10.0
libtpu: 0.0.40
codegen_flags: <defaults>
</compile_context>

<pallas_src>
import jax
import jax.numpy as jnp
from jax.experimental import pallas as pl
from jax.experimental.pallas import tpu as pltpu


def _model_kernel(xq_ref, xf_ref, w0_ref, w1_ref, w2_ref, sin_ref, cos_ref, out_ref):
    # xq_ref : (BB, Din)        bf16   row-0 of each batch element (query path)
    # xf_ref : (BB*S, Din)      bf16   batch-folded input (key/value projections)
    # w0/w1  : (Din, H)         bf16
    # w2     : (H, Dout)        bf16   (requires Din == H, as in the PyTorch model)
    # sin/cos: (S, H//2)        f32
    BB = xq_ref.shape[0]
    S, half = sin_ref.shape
    H = w0_ref.shape[1]
    Dout = w2_ref.shape[1]

    sin_t = sin_ref[...]                      # (S, half) f32
    cos_t = cos_ref[...]

    x_flat = xf_ref[...]                      # (BB*S, Din) bf16

    # ---- key path: x1 = rope(x @ w1), batch folded into the MXU M dim ----
    k_proj = jnp.dot(x_flat, w1_ref[...],
                     preferred_element_type=jnp.float32)          # (BB*S, H) f32
    k_proj = k_proj.reshape(BB, S, H)
    k1 = k_proj[..., :half]
    k2 = k_proj[..., half:]
    sin_b = sin_t[None, :, :]                                     # (1, S, half)
    cos_b = cos_t[None, :, :]
    # rotate-half halves kept separate (no lane-axis concatenate).
    k_first = k1 * cos_b - k2 * sin_b                             # (BB, S, half)
    k_second = k1 * sin_b + k2 * cos_b

    # ---- query path: only row 0 of x0 = rope(x @ w0) is ever consumed ----
    q_proj = jnp.dot(xq_ref[...], w0_ref[...],
                     preferred_element_type=jnp.float32)          # (BB, H) f32
    q1 = q_proj[:, :half]
    q2 = q_proj[:, half:]
    sin0 = sin_t[0:1, :]                                          # (1, half)
    cos0 = cos_t[0:1, :]
    q_first = q1 * cos0 - q2 * sin0                               # (BB, half)
    q_second = q1 * sin0 + q2 * cos0

    # scores[b, s] = <rope(q)[b], rope(k)[b, s]>  — no (S, S) matrix, no transpose.
    scores = jnp.sum(q_first[:, None, :] * k_first
                     + q_second[:, None, :] * k_second, axis=-1)  # (BB, S) f32

    # softmax over the key axis (one row per batch element); EUP approx reciprocal.
    m = jnp.max(scores, axis=-1, keepdims=True)
    e = jnp.exp(scores - m)
    p = e * pl.reciprocal(jnp.sum(e, axis=-1, keepdims=True), approx=True)  # (BB, S)

    # ---- value path: x2 = x @ w2, batch folded into M ----
    v_proj = jnp.dot(x_flat, w2_ref[...],
                     preferred_element_type=jnp.float32)          # (BB*S, Dout) f32
    v_proj = v_proj.reshape(BB, S, Dout)

    # output row 0 of the attention-like block: weighted sum over S.
    out = jnp.sum(p[:, :, None] * v_proj, axis=1)                 # (BB, Dout)
    out_ref[...] = out.astype(out_ref.dtype)


def custom_model_forward(x, w0, w1, w2, sin_table, cos_table):
    """x: (B, S, Din); returns (B, Dout) == CustomModel(x)  (i.e. full_output[:, 0, :])."""
    B, S, Din = x.shape
    H = w0.shape[1]
    Dout = w2.shape[1]
    half = H // 2
    assert w0.shape == (Din, H) and w1.shape == (Din, H)
    assert w2.shape[0] == Din, "PyTorch forward requires input_dim == hidden_dim (x @ weight2)"
    assert sin_table.shape == (S, half) and cos_table.shape == (S, half)
    assert S % 8 == 0, "seq_len must be a multiple of 8 (sublane tile) for the folded layout"

    # Batch block: fold several batch elements into one grid step / one MXU M dim.
    BB = B if B <= 8 else 8
    assert B % BB == 0, "batch must be a multiple of the batch block"
    nb = B // BB

    # bf16 MXU inputs, f32 accumulation; rope / softmax stay f32 inside the kernel.
    xb = x.astype(jnp.bfloat16)
    xq = xb[:, 0, :]                         # (B, Din)   only row 0 feeds the query path
    x_flat = xb.reshape(B * S, Din)          # (B*S, Din) batch folded into M
    w0b = w0.astype(jnp.bfloat16)
    w1b = w1.astype(jnp.bfloat16)
    w2b = w2.astype(jnp.bfloat16)

    return pl.pallas_call(
        _model_kernel,
        out_shape=jax.ShapeDtypeStruct((B, Dout), jnp.float32),
        grid_spec=pltpu.PrefetchScalarGridSpec(
            num_scalar_prefetch=0,
            grid=(nb,),
            in_specs=[
                pl.BlockSpec((BB, Din), lambda b: (b, 0)),          # xq (row 0 per batch)
                pl.BlockSpec((BB * S, Din), lambda b: (b, 0)),      # x, batch-folded
                pl.BlockSpec((Din, H), lambda b: (0, 0)),           # w0 (resident)
                pl.BlockSpec((Din, H), lambda b: (0, 0)),           # w1 (resident)
                pl.BlockSpec((H, Dout), lambda b: (0, 0)),          # w2 (resident)
                pl.BlockSpec((S, half), lambda b: (0, 0)),          # sin (resident)
                pl.BlockSpec((S, half), lambda b: (0, 0)),          # cos (resident)
            ],
            out_specs=pl.BlockSpec((BB, Dout), lambda b: (b, 0)),
        ),
        compiler_params=pltpu.CompilerParams(
            dimension_semantics=("parallel",)),
    )(xq, x_flat, w0b, w1b, w2b, sin_table, cos_table)


def make_rope_tables(dim, seq_len):
    half = dim // 2
    position = jnp.arange(seq_len, dtype=jnp.float32)[:, None]          # (S, 1)
    div_term = jnp.exp(jnp.arange(half, dtype=jnp.float32)
                       * (-jnp.log(10000.0) / half))                    # (half,)
    angles = position * div_term                                        # (S, half)
    return jnp.sin(angles), jnp.cos(angles)


def _reference_forward(x, w0, w1, w2, sin_t, cos_t):
    # Pure-JAX reference with the same numerical contract as the kernel:
    # bf16 matmul inputs, f32 accumulation, f32 rope/softmax.
    xb = x.astype(jnp.bfloat16)
    w0b, w1b, w2b = (w.astype(jnp.bfloat16) for w in (w0, w1, w2))

    def rope(v):
        half = v.shape[-1] // 2
        v1, v2 = v[..., :half], v[..., half:]
        return jnp.concatenate([v1 * cos_t - v2 * sin_t,
                                v1 * sin_t + v2 * cos_t], axis=-1)

    x0 = rope(jnp.einsum("bsd,dh->bsh", xb, w0b, preferred_element_type=jnp.float32))
    x1 = rope(jnp.einsum("bsd,dh->bsh", xb, w1b, preferred_element_type=jnp.float32))
    scores = jnp.einsum("bsh,bth->bst", x0, x1)
    p = jax.nn.softmax(scores, axis=-1)
    x2 = jnp.einsum("bsd,do->bso", xb, w2b, preferred_element_type=jnp.float32)
    out = jnp.einsum("bst,bto->bso", p, x2)
    return out[:, 0, :]


if __name__ == "__main__":
    # Small shapes consistent with the module. The PyTorch forward only
    # type-checks when input_dim == hidden_dim (x @ weight2).
    B, S = 2, 8
    input_dim = hidden_dim = 32
    output_dim = 32

    key = jax.random.PRNGKey(0)
    kx, k0, k1, k2 = jax.random.split(key, 4)
    x = jax.random.normal(kx, (B, S, input_dim), dtype=jnp.float32)
    w0 = jax.random.normal(k0, (input_dim, hidden_dim), dtype=jnp.float32)
    w1 = jax.random.normal(k1, (input_dim, hidden_dim), dtype=jnp.float32)
    w2 = jax.random.normal(k2, (hidden_dim, output_dim), dtype=jnp.float32)

    sin_t, cos_t = make_rope_tables(hidden_dim, S)   # (S, hidden_dim//2)

    out = custom_model_forward(x, w0, w1, w2, sin_t, cos_t)
    out = jax.block_until_ready(out)

    ref = _reference_forward(x, w0, w1, w2, sin_t, cos_t)
    assert out.shape == (B, output_dim)
    # tolerance covers the approx-reciprocal softmax denom + accumulation-order noise
    assert jnp.allclose(out, ref, atol=1e-2, rtol=1e-2), "mismatch vs JAX reference"

    print("KERNEL_OK")
</pallas_src>

<mosaic_0001>
module attributes {stable_mosaic.version = 11 : i64} {
  func.func @_model_kernel(%arg0: i32, %arg1: memref<2x32xbf16, #tpu.memory_space<vmem>>, %arg2: memref<16x32xbf16, #tpu.memory_space<vmem>>, %arg3: memref<32x32xbf16, #tpu.memory_space<vmem>>, %arg4: memref<32x32xbf16, #tpu.memory_space<vmem>>, %arg5: memref<32x32xbf16, #tpu.memory_space<vmem>>, %arg6: memref<8x16xf32, #tpu.memory_space<vmem>>, %arg7: memref<8x16xf32, #tpu.memory_space<vmem>>, %arg8: memref<2x32xf32, #tpu.memory_space<vmem>>) attributes {dimension_semantics = [#tpu.dimension_semantics<parallel>], iteration_bounds = array<i64: 1>, scalar_prefetch = 0 : i64, scratch_operands = 0 : i64, tpu.core_type = #tpu.core_type<tc>, window_params = [{transform_indices = @transform_0, window_bounds = array<i64: 2, 32>}, {transform_indices = @transform_1, window_bounds = array<i64: 16, 32>}, {pipeline_mode = #tpu.pipeline_mode<synchronous>, transform_indices = @transform_2, window_bounds = array<i64: 32, 32>}, {pipeline_mode = #tpu.pipeline_mode<synchronous>, transform_indices = @transform_3, window_bounds = array<i64: 32, 32>}, {pipeline_mode = #tpu.pipeline_mode<synchronous>, transform_indices = @transform_4, window_bounds = array<i64: 32, 32>}, {pipeline_mode = #tpu.pipeline_mode<synchronous>, transform_indices = @transform_5, window_bounds = array<i64: 8, 16>}, {pipeline_mode = #tpu.pipeline_mode<synchronous>, transform_indices = @transform_6, window_bounds = array<i64: 8, 16>}, {transform_indices = @transform_7, window_bounds = array<i64: 2, 32>}]} {
    %c0 = arith.constant 0 : index
    %c0_0 = arith.constant 0 : index
    %0 = vector.load %arg6[%c0, %c0_0] : memref<8x16xf32, #tpu.memory_space<vmem>>, vector<8x16xf32>
    %c0_1 = arith.constant 0 : index
    %c0_2 = arith.constant 0 : index
    %1 = vector.load %arg7[%c0_1, %c0_2] : memref<8x16xf32, #tpu.memory_space<vmem>>, vector<8x16xf32>
    %c0_3 = arith.constant 0 : index
    %c0_4 = arith.constant 0 : index
    %2 = vector.load %arg2[%c0_3, %c0_4] : memref<16x32xbf16, #tpu.memory_space<vmem>>, vector<16x32xbf16>
    %c0_5 = arith.constant 0 : index
    %c0_6 = arith.constant 0 : index
    %3 = vector.load %arg4[%c0_5, %c0_6] : memref<32x32xbf16, #tpu.memory_space<vmem>>, vector<32x32xbf16>
    %cst = arith.constant dense<0.000000e+00> : vector<16x32xf32>
    %4 = tpu.matmul %2, %3, %cst {dimension_numbers = #tpu.dot_dimension_numbers<[1], [0], [0], [1], [0, 0, 1, 1], [], []>} : vector<16x32xbf16>, vector<32x32xbf16>, vector<16x32xf32> -> vector<16x32xf32>
    %5 = vector.shape_cast %4 : vector<16x32xf32> to vector<2x8x32xf32>
    %6 = vector.extract_strided_slice %5 {offsets = [0, 0, 0], sizes = [2, 8, 16], strides = [1, 1, 1]} : vector<2x8x32xf32> to vector<2x8x16xf32>
    %7 = vector.extract_strided_slice %5 {offsets = [0, 0, 16], sizes = [2, 8, 16], strides = [1, 1, 1]} : vector<2x8x32xf32> to vector<2x8x16xf32>
    %8 = vector.shape_cast %0 : vector<8x16xf32> to vector<1x8x16xf32>
    %9 = vector.shape_cast %1 : vector<8x16xf32> to vector<1x8x16xf32>
    %10 = vector.broadcast %9 : vector<1x8x16xf32> to vector<2x8x16xf32>
    %11 = arith.mulf %6, %10 : vector<2x8x16xf32>
    %12 = vector.broadcast %8 : vector<1x8x16xf32> to vector<2x8x16xf32>
    %13 = arith.mulf %7, %12 : vector<2x8x16xf32>
    %14 = arith.subf %11, %13 : vector<2x8x16xf32>
    %15 = vector.broadcast %8 : vector<1x8x16xf32> to vector<2x8x16xf32>
    %16 = arith.mulf %6, %15 : vector<2x8x16xf32>
    %17 = vector.broadcast %9 : vector<1x8x16xf32> to vector<2x8x16xf32>
    %18 = arith.mulf %7, %17 : vector<2x8x16xf32>
    %19 = arith.addf %16, %18 : vector<2x8x16xf32>
    %c0_7 = arith.constant 0 : index
    %c0_8 = arith.constant 0 : index
    %20 = vector.load %arg1[%c0_7, %c0_8] : memref<2x32xbf16, #tpu.memory_space<vmem>>, vector<2x32xbf16>
    %c0_9 = arith.constant 0 : index
    %c0_10 = arith.constant 0 : index
    %21 = vector.load %arg3[%c0_9, %c0_10] : memref<32x32xbf16, #tpu.memory_space<vmem>>, vector<32x32xbf16>
    %cst_11 = arith.constant dense<0.000000e+00> : vector<2x32xf32>
    %22 = tpu.matmul %20, %21, %cst_11 {dimension_numbers = #tpu.dot_dimension_numbers<[1], [0], [0], [1], [0, 0, 1, 1], [], []>} : vector<2x32xbf16>, vector<32x32xbf16>, vector<2x32xf32> -> vector<2x32xf32>
    %23 = vector.extract_strided_slice %22 {offsets = [0, 0], sizes = [2, 16], strides = [1, 1]} : vector<2x32xf32> to vector<2x16xf32>
    %24 = vector.extract_strided_slice %22 {offsets = [0, 16], sizes = [2, 16], strides = [1, 1]} : vector<2x32xf32> to vector<2x16xf32>
    %25 = vector.extract_strided_slice %0 {offsets = [0, 0], sizes = [1, 16], strides = [1, 1]} : vector<8x16xf32> to vector<1x16xf32>
    %26 = vector.extract_strided_slice %1 {offsets = [0, 0], sizes = [1, 16], strides = [1, 1]} : vector<8x16xf32> to vector<1x16xf32>
    %27 = vector.broadcast %26 : vector<1x16xf32> to vector<2x16xf32>
    %28 = arith.mulf %23, %27 : vector<2x16xf32>
    %29 = vector.broadcast %25 : vector<1x16xf32> to vector<2x16xf32>
    %30 = arith.mulf %24, %29 : vector<2x16xf32>
    %31 = arith.subf %28, %30 : vector<2x16xf32>
    %32 = vector.broadcast %25 : vector<1x16xf32> to vector<2x16xf32>
    %33 = arith.mulf %23, %32 : vector<2x16xf32>
    %34 = vector.broadcast %26 : vector<1x16xf32> to vector<2x16xf32>
    %35 = arith.mulf %24, %34 : vector<2x16xf32>
    %36 = arith.addf %33, %35 : vector<2x16xf32>
    %37 = vector.shape_cast %31 : vector<2x16xf32> to vector<2x1x16xf32>
    %38 = vector.broadcast %37 : vector<2x1x16xf32> to vector<2x8x16xf32>
    %39 = arith.mulf %38, %14 : vector<2x8x16xf32>
    %40 = vector.shape_cast %36 : vector<2x16xf32> to vector<2x1x16xf32>
    %41 = vector.broadcast %40 : vector<2x1x16xf32> to vector<2x8x16xf32>
    %42 = arith.mulf %41, %19 : vector<2x8x16xf32>
    %43 = arith.addf %39, %42 : vector<2x8x16xf32>
    %cst_12 = arith.constant dense<0.000000e+00> : vector<2x8xf32>
    %44 = vector.multi_reduction <add>, %43, %cst_12 [2] : vector<2x8x16xf32> to vector<2x8xf32>
    %cst_13 = arith.constant dense<0xFF800000> : vector<2xf32>
    %45 = vector.multi_reduction <maximumf>, %44, %cst_13 [1] : vector<2x8xf32> to vector<2xf32>
    %46 = vector.shape_cast %45 : vector<2xf32> to vector<2x1xf32>
    %47 = vector.broadcast %46 : vector<2x1xf32> to vector<2x8xf32>
    %48 = arith.subf %44, %47 : vector<2x8xf32>
    %49 = math.exp %48 : vector<2x8xf32>
    %cst_14 = arith.constant dense<0.000000e+00> : vector<2xf32>
    %50 = vector.multi_reduction <add>, %49, %cst_14 [1] : vector<2x8xf32> to vector<2xf32>
    %51 = vector.shape_cast %50 : vector<2xf32> to vector<2x1xf32>
    %52 = tpu.reciprocal %51 {approx = true} : vector<2x1xf32> -> vector<2x1xf32>
    %53 = vector.broadcast %52 : vector<2x1xf32> to vector<2x8xf32>
    %54 = arith.mulf %49, %53 : vector<2x8xf32>
    %c0_15 = arith.constant 0 : index
    %c0_16 = arith.constant 0 : index
    %55 = vector.load %arg5[%c0_15, %c0_16] : memref<32x32xbf16, #tpu.memory_space<vmem>>, vector<32x32xbf16>
    %cst_17 = arith.constant dense<0.000000e+00> : vector<16x32xf32>
    %56 = tpu.matmul %2, %55, %cst_17 {dimension_numbers = #tpu.dot_dimension_numbers<[1], [0], [0], [1], [0, 0, 1, 1], [], []>} : vector<16x32xbf16>, vector<32x32xbf16>, vector<16x32xf32> -> vector<16x32xf32>
    %57 = vector.shape_cast %56 : vector<16x32xf32> to vector<2x8x32xf32>
    %58 = vector.shape_cast %54 : vector<2x8xf32> to vector<2x8x1xf32>
    %59 = vector.broadcast %58 : vector<2x8x1xf32> to vector<2x8x32xf32>
    %60 = arith.mulf %59, %57 : vector<2x8x32xf32>
    %cst_18 = arith.constant dense<0.000000e+00> : vector<2x32xf32>
    %61 = vector.multi_reduction <add>, %60, %cst_18 [1] : vector<2x8x32xf32> to vector<2x32xf32>
    %c0_19 = arith.constant 0 : index
    %c0_20 = arith.constant 0 : index
    %62 = vector.load %arg8[%c0_19, %c0_20] : memref<2x32xf32, #tpu.memory_space<vmem>>, vector<2x32xf32>
    tpu.vector_store %arg8[%c0_19, %c0_20], %61 {strides = array<i32>} : memref<2x32xf32, #tpu.memory_space<vmem>>, vector<2x32xf32>,
    return
  }
  func.func @transform_0(%arg0: i32) -> (i32, i32) {
    %c0_i32 = arith.constant 0 : i32
    %c0_i32_0 = arith.constant 0 : i32
    return %arg0, %c0_i32 : i32, i32
  }
  func.func @transform_1(%arg0: i32) -> (i32, i32) {
    %c0_i32 = arith.constant 0 : i32
    %c0_i32_0 = arith.constant 0 : i32
    return %arg0, %c0_i32 : i32, i32
  }
  func.func @transform_2(%arg0: i32) -> (i32, i32) {
    %c0_i32 = arith.constant 0 : i32
    %c0_i32_0 = arith.constant 0 : i32
    %c0_i32_1 = arith.constant 0 : i32
    return %c0_i32, %c0_i32_0 : i32, i32
  }
  func.func @transform_3(%arg0: i32) -> (i32, i32) {
    %c0_i32 = arith.constant 0 : i32
    %c0_i32_0 = arith.constant 0 : i32
    %c0_i32_1 = arith.constant 0 : i32
    return %c0_i32, %c0_i32_0 : i32, i32
  }
  func.func @transform_4(%arg0: i32) -> (i32, i32) {
    %c0_i32 = arith.constant 0 : i32
    %c0_i32_0 = arith.constant 0 : i32
    %c0_i32_1 = arith.constant 0 : i32
    return %c0_i32, %c0_i32_0 : i32, i32
  }
  func.func @transform_5(%arg0: i32) -> (i32, i32) {
    %c0_i32 = arith.constant 0 : i32
    %c0_i32_0 = arith.constant 0 : i32
    %c0_i32_1 = arith.constant 0 : i32
    return %c0_i32, %c0_i32_0 : i32, i32
  }
  func.func @transform_6(%arg0: i32) -> (i32, i32) {
    %c0_i32 = arith.constant 0 : i32
    %c0_i32_0 = arith.constant 0 : i32
    %c0_i32_1 = arith.constant 0 : i32
    return %c0_i32, %c0_i32_0 : i32, i32
  }
  func.func @transform_7(%arg0: i32) -> (i32, i32) {
    %c0_i32 = arith.constant 0 : i32
    %c0_i32_0 = arith.constant 0 : i32
    return %arg0, %c0_i32 : i32, i32
  }
}

</mosaic_0001>

<llo_original>
// kernel: tpu_custom_call.1
$region0: #{tpu_custom_call.1}
  #allocation0 [shape = 'u32[]', space=smem, size = 0x4, offset = 0x4, fixed_abs, tag = 'smem constant byte address 0x4 - core index']
  #allocation1 [shape = 'u32[144,128]{1,0:T(1,128)}', space=vmem, size = 0x12000, scoped, tag = 'internal scratch']
  %s0 = inlined_call_operand.hbm [shape: bf16[2,32], index: 0, kind: input, shape index: {}]
  %s1 = inlined_call_operand.hbm [shape: bf16[16,32], index: 1, kind: input, shape index: {}]
  %s2 = inlined_call_operand.hbm [shape: bf16[32,32], index: 2, kind: input, shape index: {}]
  %s3 = inlined_call_operand.hbm [shape: bf16[32,32], index: 3, kind: input, shape index: {}]
  %s4 = inlined_call_operand.hbm [shape: bf16[32,32], index: 4, kind: input, shape index: {}]
  %s5 = inlined_call_operand.vmem [shape: f32[8,16], index: 5, kind: input, shape index: {}]
  %s6 = inlined_call_operand.vmem [shape: f32[8,16], index: 6, kind: input, shape index: {}]
  %s7 = inlined_call_operand.hbm [shape: f32[2,32], index: 7, kind: output, shape index: {}]
  %s8 = sld [smem:[#allocation0]]
  $region58: #{tpu_custom_call.1} parent=0
    _
  %s10 = ssub.s32 1, %s8
  %s11 = scalar_select 0, %s10, %s8
  $region1: #{tpu_custom_call.1} parent=0
    #allocation2 [shape = 'u8[512]{0}', space=vmem, size = 0x400, scoped, tag = 'input window, operand 0, single buffered']
    #allocation3 [shape = 's32[1]{0}', space=sflag, size = 0x4, scoped, tag = 'scoped memory for tpu_custom_call.1']
    #allocation4 [shape = 's32[1]{0}', space=sflag, size = 0x4, scoped, tag = 'scoped memory for tpu_custom_call.1']
    #allocation5 [shape = 'u8[4096]{0}', space=vmem, size = 0x1000, scoped, tag = 'input window, operand 1, single buffered']
    #allocation6 [shape = 's32[1]{0}', space=sflag, size = 0x4, scoped, tag = 'scoped memory for tpu_custom_call.1']
    #allocation7 [shape = 'u8[8192]{0}', space=vmem, size = 0x2000, scoped, tag = 'input window, operand 2, single buffered']
    #allocation8 [shape = 'u8[8192]{0}', space=vmem, size = 0x2000, scoped, tag = 'input window, operand 3, single buffered']
    #allocation9 [shape = 's32[1]{0}', space=sflag, size = 0x4, scoped, tag = 'scoped memory for tpu_custom_call.1']
    #allocation10 [shape = 'u8[8192]{0}', space=vmem, size = 0x2000, scoped, tag = 'input window, operand 4, single buffered']
    #allocation11 [shape = 'u8[1024]{0}', space=vmem, size = 0x400, scoped, tag = 'output window, operand 0, single buffered']
    %12 = vsyncpa [#allocation3], 0
    %13 = vsyncpa [#allocation6], 0
    %14 = vsyncpa [#allocation9], 0
    %15 = vsyncpa [#allocation4], 0
    // Predicated region
    $region2: #{tpu_custom_call.1} parent=1 // pred_check
      _
    $region3: #{tpu_custom_call.1} parent=1 // pred_check_branch
      %17 = sbr.rel (0) target = $region5
    $region4: #{tpu_custom_call.1} parent=1 // pred_region
      %s19 = ssub.s32 16, 16
      %20 = vsyncadd [#allocation3], %s19
      %s22 = sshll.u32 [#allocation2], 4
      %s23 = int_to_ptr.vmem [resolvable:$true] %s22
      %25 = dma.hbm_to_vmem [thread:$0]  %s0, 16, %s23, [#allocation3]
    $region5: #{tpu_custom_call.1} parent=1 // pred_fallthru
      _
    // Predicated region
    $region6: #{tpu_custom_call.1} parent=1 // pred_check
      _
    $region7: #{tpu_custom_call.1} parent=1 // pred_check_branch
      %27 = sbr.rel (0) target = $region9
    $region8: #{tpu_custom_call.1} parent=1 // pred_region
      %s29 = ssub.s32 128, 128
      %30 = vsyncadd [#allocation6], %s29
      %s31 = sshll.u32 [#allocation5], 4
      %s32 = int_to_ptr.vmem [resolvable:$true] %s31
      %37 = dma.hbm_to_vmem [thread:$0]  %s1, 128, %s32, [#allocation6], 64, 64, 4
    $region9: #{tpu_custom_call.1} parent=1 // pred_fallthru
      _
    // Predicated region
    $region10: #{tpu_custom_call.1} parent=1 // pred_check
      _
    $region11: #{tpu_custom_call.1} parent=1 // pred_check_branch
      %39 = sbr.rel (0) target = $region13
    $region12: #{tpu_custom_call.1} parent=1 // pred_region
      %s41 = ssub.s32 256, 256
      %42 = vsyncadd [#allocation6], %s41
      %s43 = sshll.u32 [#allocation7], 4
      %s44 = int_to_ptr.vmem [resolvable:$true] %s43
      %49 = dma.hbm_to_vmem [thread:$0]  %s2, 256, %s44, [#allocation6], 64, 64, 4
    $region13: #{tpu_custom_call.1} parent=1 // pred_fallthru
      _
    // Predicated region
    $region14: #{tpu_custom_call.1} parent=1 // pred_check
      _
    $region15: #{tpu_custom_call.1} parent=1 // pred_check_branch
      %51 = sbr.rel (0) target = $region17
    $region16: #{tpu_custom_call.1} parent=1 // pred_region
      %s53 = ssub.s32 256, 256
      %54 = vsyncadd [#allocation9], %s53
      %s55 = sshll.u32 [#allocation8], 4
      %s56 = int_to_ptr.vmem [resolvable:$true] %s55
      %61 = dma.hbm_to_vmem [thread:$0]  %s3, 256, %s56, [#allocation9], 64, 64, 4
    $region17: #{tpu_custom_call.1} parent=1 // pred_fallthru
      _
    // Predicated region
    $region18: #{tpu_custom_call.1} parent=1 // pred_check
      _
    $region19: #{tpu_custom_call.1} parent=1 // pred_check_branch
      %63 = sbr.rel (0) target = $region21
    $region20: #{tpu_custom_call.1} parent=1 // pred_region
      %s65 = ssub.s32 256, 256
      %66 = vsyncadd [#allocation9], %s65
      %s67 = sshll.u32 [#allocation10], 4
      %s68 = int_to_ptr.vmem [resolvable:$true] %s67
      %73 = dma.hbm_to_vmem [thread:$0]  %s4, 256, %s68, [#allocation9], 64, 64, 4
    $region21: #{tpu_custom_call.1} parent=1 // pred_fallthru
      _
    // Predicated region
    $region22: #{tpu_custom_call.1} parent=1 // pred_check
      _
    $region23: #{tpu_custom_call.1} parent=1 // pred_check_branch
      %75 = sbr.rel (0) target = $region25
    $region24: #{tpu_custom_call.1} parent=1 // pred_region
      _
    $region25: #{tpu_custom_call.1} parent=1 // pred_fallthru
      _
    // Predicated region
    $region26: #{tpu_custom_call.1} parent=1 // pred_check
      _
    $region27: #{tpu_custom_call.1} parent=1 // pred_check_branch
      %77 = sbr.rel (0) target = $region29
    $region28: #{tpu_custom_call.1} parent=1 // pred_region
      _
    $region29: #{tpu_custom_call.1} parent=1 // pred_fallthru
      _
    // Predicated region
    $region30: #{tpu_custom_call.1} parent=1 // pred_check
      _
    $region31: #{tpu_custom_call.1} parent=1 // pred_check_branch
      %79 = sbr.rel (0) target = $region33
    $region32: #{tpu_custom_call.1} parent=1 // pred_region
      %80 = dma.done [#allocation3], 16
    $region33: #{tpu_custom_call.1} parent=1 // pred_fallthru
      _
    // Predicated region
    $region34: #{tpu_custom_call.1} parent=1 // pred_check
      _
    $region35: #{tpu_custom_call.1} parent=1 // pred_check_branch
      %82 = sbr.rel (0) target = $region37
    $region36: #{tpu_custom_call.1} parent=1 // pred_region
      %83 = dma.done [#allocation6], 128
    $region37: #{tpu_custom_call.1} parent=1 // pred_fallthru
      _
    // Predicated region
    $region38: #{tpu_custom_call.1} parent=1 // pred_check
      _
    $region39: #{tpu_custom_call.1} parent=1 // pred_check_branch
      %85 = sbr.rel (0) target = $region41
    $region40: #{tpu_custom_call.1} parent=1 // pred_region
      %86 = dma.done [#allocation6], 256
    $region41: #{tpu_custom_call.1} parent=1 // pred_fallthru
      _
    // Predicated region
    $region42: #{tpu_custom_call.1} parent=1 // pred_check
      _
    $region43: #{tpu_custom_call.1} parent=1 // pred_check_branch
      %88 = sbr.rel (0) target = $region45
    $region44: #{tpu_custom_call.1} parent=1 // pred_region
      %89 = dma.done [#allocation9], 256
    $region45: #{tpu_custom_call.1} parent=1 // pred_fallthru
      _
    // Predicated region
    $region46: #{tpu_custom_call.1} parent=1 // pred_check
      _
    $region47: #{tpu_custom_call.1} parent=1 // pred_check_branch
      %91 = sbr.rel (0) target = $region49
    $region48: #{tpu_custom_call.1} parent=1 // pred_region
      %92 = dma.done [#allocation9], 256
    $region49: #{tpu_custom_call.1} parent=1 // pred_fallthru
      _
    %v94 = vld [vmem:[%s5] sm:$0xff]
    %v95 = vld [vmem:[%s6] sm:$0xff]
    %v96 = vld [vmem:[#allocation5] sm:$0xf]
    %v97 = vld [vmem:[#allocation5 + $0x4] sm:$0xf]
    %v98 = vld [vmem:[#allocation8] sm:$0xf]
    %v99 = vld [vmem:[#allocation8 + $0x4] sm:$0xf]
    %v100 = vld [vmem:[#allocation8 + $0x8] sm:$0xf]
    %v101 = vld [vmem:[#allocation8 + $0xc] sm:$0xf]
    %v104 = vunpack.c.l.b16 %v96
    %v105 = vunpack.c.l.b16 %v97
    %v106 = vpack.c.b16 %v105, %v104
    %v111 = vunpack.c.l.b16 %v98
    %v112 = vunpack.c.l.b16 %v99
    %v113 = vunpack.c.l.b16 %v100
    %v114 = vunpack.c.l.b16 %v101
    %v115 = vpack.c.b16 %v112, %v111
    %v116 = vpack.c.b16 %v114, %v113
    %vm119 = vcmask 261120
    %v121 = vsel %vm119, %v106, 0
    %123 = vmatprep.subr.bf16.mxu0 0
    %124 = vmatpush1.bf16.msra.mxu0 %v115
    %125 = vmatprep.subr.bf16.mxu0 0
    %126 = vmatpush1.bf16.msra.mxu0 %v116
    %127 = vmatprep.subr.bf16.mxu0 0
    %128 = vmatpush1.bf16.msra.mxu0 0
    %129 = vmatprep.subr.bf16.mxu0 0
    %130 = vmatpush1.bf16.msra.mxu0 0
    %131 = vmatprep.subr.bf16.mxu0 0
    %132 = vmatpush1.bf16.msra.mxu0 0
    %133 = vmatprep.subr.bf16.mxu0 0
    %134 = vmatpush1.bf16.msra.mxu0 0
    %135 = vmatprep.subr.bf16.mxu0 0
    %136 = vmatpush1.bf16.msra.mxu0 0
    %137 = vmatprep.subr.bf16.mxu0 0
    %138 = vmatpush1.bf16.msra.mxu0 0
    %139 = vmatprep.subr.bf16.mxu0 0
    %140 = vmatpush1.bf16.msra.mxu0 0
    %141 = vmatprep.subr.bf16.mxu0 0
    %142 = vmatpush1.bf16.msra.mxu0 0
    %143 = vmatprep.subr.bf16.mxu0 0
    %144 = vmatpush1.bf16.msra.mxu0 0
    %145 = vmatprep.subr.bf16.mxu0 0
    %146 = vmatpush1.bf16.msra.mxu0 0
    %147 = vmatprep.subr.bf16.mxu0 0
    %148 = vmatpush1.bf16.msra.mxu0 0
    %149 = vmatprep.subr.bf16.mxu0 0
    %150 = vmatpush1.bf16.msra.mxu0 0
    %151 = vmatprep.subr.bf16.mxu0 0
    %152 = vmatpush1.bf16.msra.mxu0 0
    %153 = vmatprep.subr.bf16.mxu0 0
    %154 = vmatpush1.bf16.msra.mxu0 0
    %155 = vmatprep.mubr.bf16.mxu0 0
    %156 = vmatmul.mubr.bf16.gmra.mrb[0].mxu0 %v121
    %v157 = vpop.f32.mrb[0].mxu0
    %v158 = vadd.f32 0.0, %v157
    %v159 = vpop.f32.mrb[0].mxu0
    %v160 = vpop.f32.mrb[0].mxu0
    %v161 = vadd.f32 0.0, %v160
    %v162 = vpop.f32.mrb[0].mxu0
    %163 = vdwg.mxu0
    %v164 = vmul.f32 %v158, %v95
    %v165 = vmul.f32 %v161, %v95
    %167 = vrot.lane.b32.xlu0 %v94, 16
    %v168 = vpop.permute.xlu0 %167
    %v170 = vmul.f32 %v158, %v168
    %v171 = vmul.f32 %v161, %v168
    %174 = vrot.lane.b32.xlu0 %v170, 112
    %v175 = vpop.permute.xlu0 %174
    %176 = vrot.lane.b32.xlu0 %v171, 112
    %v177 = vpop.permute.xlu0 %176
    %v180 = vsub.f32 %v164, %v175
    %v181 = vsub.f32 %v165, %v177
    %v182 = vmul.f32 %v158, %v94
    %v183 = vmul.f32 %v161, %v94
    %185 = vrot.lane.b32.xlu0 %v95, 16
    %v186 = vpop.permute.xlu0 %185
    %v188 = vmul.f32 %v158, %v186
    %v189 = vmul.f32 %v161, %v186
    %192 = vrot.lane.b32.xlu0 %v188, 112
    %v193 = vpop.permute.xlu0 %192
    %194 = vrot.lane.b32.xlu0 %v189, 112
    %v195 = vpop.permute.xlu0 %194
    %v198 = vadd.f32 %v182, %v193
    %v199 = vadd.f32 %v183, %v195
    %v200 = vld [vmem:[#allocation2] sm:$0x1]
    %v201 = vld [vmem:[#allocation7] sm:$0xf]
    %v202 = vld [vmem:[#allocation7 + $0x4] sm:$0xf]
    %v203 = vld [vmem:[#allocation7 + $0x8] sm:$0xf]
    %v204 = vld [vmem:[#allocation7 + $0xc] sm:$0xf]
    %v209 = vunpack.c.l.b16 %v201
    %v210 = vunpack.c.l.b16 %v202
    %v211 = vunpack.c.l.b16 %v203
    %v212 = vunpack.c.l.b16 %v204
    %v213 = vpack.c.b16 %v210, %v209
    %v214 = vpack.c.b16 %v212, %v211
    %v218 = vsel %vm119, %v200, 0
    %220 = vmatprep.subr.bf16.mxu0 0
    %221 = vmatpush1.bf16.msra.mxu0 %v213
    %222 = vmatprep.subr.bf16.mxu0 0
    %223 = vmatpush1.bf16.msra.mxu0 %v214
    %224 = vmatprep.subr.bf16.mxu0 0
    %225 = vmatpush1.bf16.msra.mxu0 0
    %226 = vmatprep.subr.bf16.mxu0 0
    %227 = vmatpush1.bf16.msra.mxu0 0
    %228 = vmatprep.subr.bf16.mxu0 0
    %229 = vmatpush1.bf16.msra.mxu0 0
    %230 = vmatprep.subr.bf16.mxu0 0
    %231 = vmatpush1.bf16.msra.mxu0 0
    %232 = vmatprep.subr.bf16.mxu0 0
    %233 = vmatpush1.bf16.msra.mxu0 0
    %234 = vmatprep.subr.bf16.mxu0 0
    %235 = vmatpush1.bf16.msra.mxu0 0
    %236 = vmatprep.subr.bf16.mxu0 0
    %237 = vmatpush1.bf16.msra.mxu0 0
    %238 = vmatprep.subr.bf16.mxu0 0
    %239 = vmatpush1.bf16.msra.mxu0 0
    %240 = vmatprep.subr.bf16.mxu0 0
    %241 = vmatpush1.bf16.msra.mxu0 0
    %242 = vmatprep.subr.bf16.mxu0 0
    %243 = vmatpush1.bf16.msra.mxu0 0
    %244 = vmatprep.subr.bf16.mxu0 0
    %245 = vmatpush1.bf16.msra.mxu0 0
    %246 = vmatprep.subr.bf16.mxu0 0
    %247 = vmatpush1.bf16.msra.mxu0 0
    %248 = vmatprep.subr.bf16.mxu0 0
    %249 = vmatpush1.bf16.msra.mxu0 0
    %250 = vmatprep.subr.bf16.mxu0 0
    %251 = vmatpush1.bf16.msra.mxu0 0
    %252 = vmatprep.mubr.bf16.mxu0 0
    %253 = vmatmul.mubr.bf16.gmra.mrb[0].mxu0 %v218
    %v254 = vpop.f32.mrb[0].mxu0
    %v255 = vadd.f32 0.0, %v254
    %v256 = vpop.f32.mrb[0].mxu0
    %v257 = vpop.f32.mrb[0].mxu0
    %v258 = vpop.f32.mrb[0].mxu0
    %259 = vdwg.mxu0
    %v260 = vlaneseq
    %v261 = vshrl.u32 %v260, 7
    %v262 = vsub.s32 0, %v261
    %v263 = vrot.slane %v95, %v262
    %v264 = vmul.f32 %v255, %v263
    %v265 = vlaneseq
    %v266 = vshrl.u32 %v265, 7
    %v267 = vsub.s32 0, %v266
    %v268 = vrot.slane %v94, %v267
    %270 = vrot.lane.b32.xlu0 %v268, 16
    %v271 = vpop.permute.xlu0 %270
    %v273 = vmul.f32 %v255, %v271
    %275 = vrot.lane.b32.xlu0 %v273, 112
    %v276 = vpop.permute.xlu0 %275
    %v278 = vsub.f32 %v264, %v276
    %v279 = vmul.f32 %v255, %v268
    %281 = vrot.lane.b32.xlu0 %v263, 16
    %v282 = vpop.permute.xlu0 %281
    %v284 = vmul.f32 %v255, %v282
    %286 = vrot.lane.b32.xlu0 %v284, 112
    %v287 = vpop.permute.xlu0 %286
    %v289 = vadd.f32 %v279, %v287
    %v292 = vunpack.c.l.s4 1966171168
    %v293 = vunpack.c.0.s8 %v292
    %v294 = vlaneseq
    %v295 = vshrl.u32 %v294, 7
    %v296 = vsub.s32 %v293, %v295
    %v297 = vrot.slane %v278, %v296
    %v298 = vcombine.high %v297, %v297
    %v300 = vunpack.c.l.s4 1966171168
    %v301 = vunpack.c.0.s8 %v300
    %v302 = vlaneseq
    %v303 = vshrl.u32 %v302, 7
    %v304 = vsub.s32 %v301, %v303
    %v305 = vrot.slane %v297, %v304
    %v307 = vunpack.c.l.s4 1966171168
    %v308 = vunpack.c.0.s8 %v307
    %v309 = vlaneseq
    %v310 = vshrl.u32 %v309, 7
    %v311 = vsub.s32 %v308, %v310
    %v312 = vrot.slane %v298, %v311
    %v313 = vlaneseq
    %v314 = vshrl.u32 %v313, 7
    %v315 = vsub.s32 0, %v314
    %v316 = vrot.slane %v305, %v315
    %v317 = vlaneseq
    %v318 = vshrl.u32 %v317, 7
    %v319 = vsub.s32 0, %v318
    %v320 = vrot.slane %v312, %v319
    %v323 = vmul.f32 %v316, %v180
    %v324 = vmul.f32 %v320, %v181
    %v327 = vunpack.c.l.s4 1966171168
    %v328 = vunpack.c.0.s8 %v327
    %v329 = vlaneseq
    %v330 = vshrl.u32 %v329, 7
    %v331 = vsub.s32 %v328, %v330
    %v332 = vrot.slane %v289, %v331
    %v333 = vcombine.high %v332, %v332
    %v335 = vunpack.c.l.s4 1966171168
    %v336 = vunpack.c.0.s8 %v335
    %v337 = vlaneseq
    %v338 = vshrl.u32 %v337, 7
    %v339 = vsub.s32 %v336, %v338
    %v340 = vrot.slane %v332, %v339
    %v342 = vunpack.c.l.s4 1966171168
    %v343 = vunpack.c.0.s8 %v342
    %v344 = vlaneseq
    %v345 = vshrl.u32 %v344, 7
    %v346 = vsub.s32 %v343, %v345
    %v347 = vrot.slane %v333, %v346
    %v348 = vlaneseq
    %v349 = vshrl.u32 %v348, 7
    %v350 = vsub.s32 0, %v349
    %v351 = vrot.slane %v340, %v350
    %v352 = vlaneseq
    %v353 = vshrl.u32 %v352, 7
    %v354 = vsub.s32 0, %v353
    %v355 = vrot.slane %v347, %v354
    %v358 = vmul.f32 %v351, %v198
    %v359 = vmul.f32 %v355, %v199
    %v360 = vadd.f32 %v323, %v358
    %v361 = vadd.f32 %v324, %v359
    %vm362 = vcmask 130048
    %v363 = vsel %vm362, %v360, 0.0
    %364 = vadd.xlane.f32.xlu0 %v363
    %v365 = vpop.xlane.xlu0 %364
    %v366 = vsel %vm362, %v361, 0.0
    %367 = vadd.xlane.f32.xlu0 %v366
    %v368 = vpop.xlane.xlu0 %367
    %v371 = vlaneseq
    %v372 = vand.u32 %v371, 127
    %v373 = vlaneseq
    %v374 = vshrl.u32 %v373, 7
    %v375 = vsub.s32 %v372, %v374
    %v376 = vrot.slane %v365, %v375
    %v377 = vlaneseq
    %v378 = vshrl.u32 %v377, 7
    %v379 = vsub.s32 %v372, %v378
    %v380 = vrot.slane %v368, %v379
    %vm381 = vcmask 1041409
    %v382 = vsel %vm381, %v380, %v376
    %vm384 = vcmask 58368
    %v385 = vsel %vm384, %v382, -inf
    %386 = vmax.xlane.f32.xlu0 %v385
    %v387 = vpop.xlane.xlu0 %386
    %v389 = vlaneseq
    %v390 = vshrl.u32 %v389, 7
    %v391 = vsub.s32 0, %v390
    %v392 = vrot.slane %v387, %v391
    %v393 = vlaneseq
    %v394 = vshrl.u32 %v393, 7
    %v395 = vsub.s32 1, %v394
    %v396 = vrot.slane %v387, %v395
    %v399 = vsub.f32 %v365, %v392
    %v400 = vsub.f32 %v368, %v396
    %v401 = vmul.f32 %v399, 1.442695
    %v402 = vpow.pop %v401
    %v403 = vmul.f32 %v400, 1.442695
    %v404 = vpow.pop %v403
    %407 = vset.pattern.permute.xlu0 0
    %408 = vperm.xlu0 %407, %v402
    %v409 = vpop.permute.xlu0 %408
    %410 = vset.pattern.permute.xlu0 0
    %411 = vperm.xlu0 %410, %v404
    %v412 = vpop.permute.xlu0 %411
    %v413 = vlaneseq
    %v414 = vshrl.u32 %v413, 7
    %v415 = vsub.s32 %v372, %v414
    %v416 = vrot.slane %v409, %v415
    %v417 = vlaneseq
    %v418 = vshrl.u32 %v417, 7
    %v419 = vsub.s32 %v372, %v418
    %v420 = vrot.slane %v412, %v419
    %v421 = vsel %vm381, %v420, %v416
    %v423 = vsel %vm384, %v421, 0.0
    %424 = vadd.xlane.f32.xlu0 %v423
    %v425 = vpop.xlane.xlu0 %424
    %v426 = vrcp.pop %v425
    %v428 = vlaneseq
    %v429 = vshrl.u32 %v428, 7
    %v430 = vsub.s32 0, %v429
    %v431 = vrot.slane %v426, %v430
    %v432 = vlaneseq
    %v433 = vshrl.u32 %v432, 7
    %v434 = vsub.s32 1, %v433
    %v435 = vrot.slane %v426, %v434
    %v438 = vmul.f32 %v402, %v431
    %v439 = vmul.f32 %v404, %v435
    %v440 = vld [vmem:[#allocation10] sm:$0xf]
    %v441 = vld [vmem:[#allocation10 + $0x4] sm:$0xf]
    %v442 = vld [vmem:[#allocation10 + $0x8] sm:$0xf]
    %v443 = vld [vmem:[#allocation10 + $0xc] sm:$0xf]
    %v448 = vunpack.c.l.b16 %v440
    %v449 = vunpack.c.l.b16 %v441
    %v450 = vunpack.c.l.b16 %v442
    %v451 = vunpack.c.l.b16 %v443
    %v452 = vpack.c.b16 %v449, %v448
    %v453 = vpack.c.b16 %v451, %v450
    %456 = vmatprep.subr.bf16.mxu0 0
    %457 = vmatpush1.bf16.msra.mxu0 %v452
    %458 = vmatprep.subr.bf16.mxu0 0
    %459 = vmatpush1.bf16.msra.mxu0 %v453
    %460 = vmatprep.subr.bf16.mxu0 0
    %461 = vmatpush1.bf16.msra.mxu0 0
    %462 = vmatprep.subr.bf16.mxu0 0
    %463 = vmatpush1.bf16.msra.mxu0 0
    %464 = vmatprep.subr.bf16.mxu0 0
    %465 = vmatpush1.bf16.msra.mxu0 0
    %466 = vmatprep.subr.bf16.mxu0 0
    %467 = vmatpush1.bf16.msra.mxu0 0
    %468 = vmatprep.subr.bf16.mxu0 0
    %469 = vmatpush1.bf16.msra.mxu0 0
    %470 = vmatprep.subr.bf16.mxu0 0
    %471 = vmatpush1.bf16.msra.mxu0 0
    %472 = vmatprep.subr.bf16.mxu0 0
    %473 = vmatpush1.bf16.msra.mxu0 0
    %474 = vmatprep.subr.bf16.mxu0 0
    %475 = vmatpush1.bf16.msra.mxu0 0
    %476 = vmatprep.subr.bf16.mxu0 0
    %477 = vmatpush1.bf16.msra.mxu0 0
    %478 = vmatprep.subr.bf16.mxu0 0
    %479 = vmatpush1.bf16.msra.mxu0 0
    %480 = vmatprep.subr.bf16.mxu0 0
    %481 = vmatpush1.bf16.msra.mxu0 0
    %482 = vmatprep.subr.bf16.mxu0 0
    %483 = vmatpush1.bf16.msra.mxu0 0
    %484 = vmatprep.subr.bf16.mxu0 0
    %485 = vmatpush1.bf16.msra.mxu0 0
    %486 = vmatprep.subr.bf16.mxu0 0
    %487 = vmatpush1.bf16.msra.mxu0 0
    %488 = vmatprep.mubr.bf16.mxu0 0
    %489 = vmatmul.mubr.bf16.gmra.mrb[0].mxu0 %v121
    %v490 = vpop.f32.mrb[0].mxu0
    %v491 = vadd.f32 0.0, %v490
    %v492 = vpop.f32.mrb[0].mxu0
    %v493 = vpop.f32.mrb[0].mxu0
    %v494 = vadd.f32 0.0, %v493
    %v495 = vpop.f32.mrb[0].mxu0
    %496 = vdwg.mxu0
    %498 = vset.pattern.permute.xlu0 0
    %499 = vperm.xlu0 %498, %v438
    %v500 = vpop.permute.xlu0 %499
    %503 = vset.pattern.permute.xlu0 0
    %504 = vperm.xlu0 %503, %v439
    %v505 = vpop.permute.xlu0 %504
    %v507 = vmul.f32 %v500, %v491
    %v508 = vmul.f32 %v505, %v494
    %v509 = vsel %vm119, %v507, 0.0
    %v510 = vrot.slane %v509, 4
    %v511 = vadd.f32 %v509, %v510
    %v512 = vrot.slane %v511, 2
    %v513 = vadd.f32 %v511, %v512
    %v514 = vrot.slane %v513, 1
    %v515 = vadd.f32 %v513, %v514
    %v516 = vsel %vm119, %v508, 0.0
    %v517 = vrot.slane %v516, 4
    %v518 = vadd.f32 %v516, %v517
    %v519 = vrot.slane %v518, 2
    %v520 = vadd.f32 %v518, %v519
    %v521 = vrot.slane %v520, 1
    %v522 = vadd.f32 %v520, %v521
    %v525 = vsel %vm381, %v522, %v515
    %vm527 = vcmask 254976
    %528 = vst.msk [vmem:[#allocation11] sm:$0x3] %vm527, %v525
    // Predicated region
    $region50: #{tpu_custom_call.1} parent=1 // pred_check
      _
    $region51: #{tpu_custom_call.1} parent=1 // pred_check_branch
      %530 = sbr.rel (0) target = $region53
    $region52: #{tpu_custom_call.1} parent=1 // pred_region
      %s532 = ssub.s32 32, 32
      %533 = vsyncadd [#allocation4], %s532
      %s535 = sshll.u32 [#allocation11], 4
      %s536 = int_to_ptr.vmem [resolvable:$true] %s535
      %538 = dma.vmem_to_hbm [thread:$0]  %s536, 32, %s7, [#allocation4]
    $region53: #{tpu_custom_call.1} parent=1 // pred_fallthru
      _
    // Predicated region
    $region54: #{tpu_custom_call.1} parent=1 // pred_check
      _
    $region55: #{tpu_custom_call.1} parent=1 // pred_check_branch
      %540 = sbr.rel (0) target = $region57
    $region56: #{tpu_custom_call.1} parent=1 // pred_region
      %541 = dma.done [#allocation4], 32
    $region57: #{tpu_custom_call.1} parent=1 // pred_fallthru
      _
    %542 = vsyncpa [#allocation3], 1
    %543 = vsyncpa [#allocation6], 1
    %544 = vsyncpa [#allocation9], 1
    %545 = vsyncpa [#allocation4], 1

</llo_original>
